<compile_context>
chip_gen: v6e
topology: v6e:2x2x1
jax: 0.10.0
libtpu: 0.0.40
codegen_flags: <defaults>
</compile_context>

<pallas_src>
import functools

import jax
import jax.numpy as jnp
from jax.experimental import pallas as pl
from jax.experimental.pallas import tpu as pltpu


# ----------------------------------------------------------------------------
# Tiling plan: lane tile tm (multiple of 128, <= cap) and padded pixel count.
# Prefers an even number (>=2) of grid steps so v7x's 2 TensorCores both work.
# ----------------------------------------------------------------------------
def _plan_m(m, cap):
    mp = max(128, -(-m // 128) * 128)          # round pixels up to a lane multiple
    if mp == 128:
        return 128, 128                        # too small to split
    steps = -(-mp // cap)
    steps = max(2, steps + (steps % 2))        # even, >= 2 grid steps
    tm = -(-mp // steps)
    tm = -(-tm // 128) * 128
    return tm, steps * tm


def _divmod_static(p, d):
    """Integer divmod by a static positive divisor; shift/mask for powers of 2."""
    if d & (d - 1) == 0:
        s = d.bit_length() - 1
        return p >> s, p & (d - 1)
    q = p // d
    return q, p - q * d


# ----------------------------------------------------------------------------
# Kernel 1: transposed fused conv (im2col) matmul + bias + SiLU.
#   y^T = SiLU(W^T @ A^T + b)   -- channels on sublanes, pixels on lanes.
# bf16 MXU inputs, f32 accumulate, bf16 lane-dense output store.
# ----------------------------------------------------------------------------
def _convT_silu_kernel(aT_ref, wT_ref, b_ref, o_ref):
    acc = jnp.dot(wT_ref[...], aT_ref[...], preferred_element_type=jnp.float32)
    acc = acc + b_ref[...]
    # SiLU(x) = x * sigmoid(x); exp + approx reciprocal both go to the EUP.
    acc = acc * pl.reciprocal(1.0 + jnp.exp(-acc), approx=True)
    o_ref[...] = acc.astype(o_ref.dtype)


def convT_silu(aT, wT, b, *, cap=8192):
    """aT:[K,M] bf16, wT:[N,K] bf16, b:[N] f32 -> [N,M] bf16 (lane-dense)."""
    K, M = aT.shape
    N = wT.shape[0]
    tm, mp = _plan_m(M, cap)
    if mp != M:
        aT = jnp.pad(aT, ((0, 0), (0, mp - M)))
    out = pl.pallas_call(
        _convT_silu_kernel,
        out_shape=jax.ShapeDtypeStruct((N, mp), jnp.bfloat16),
        grid=(mp // tm,),
        in_specs=[pl.BlockSpec((K, tm), lambda i: (0, i)),
                  pl.BlockSpec((N, K), lambda i: (0, 0)),
                  pl.BlockSpec((N, 1), lambda i: (0, 0))],
        out_specs=pl.BlockSpec((N, tm), lambda i: (0, i)),
        compiler_params=pltpu.CompilerParams(
            dimension_semantics=("parallel",)),
    )(aT, wT, b.reshape(N, 1))
    return out[:, :M] if mp != M else out


# ----------------------------------------------------------------------------
# Kernel 2: FUSED conv2 + Detect head (1x1 conv) + sigmoid decode + bbox area.
# Attribute-major, lane-dense output slab [8*na, M]:
#   rows [g*na:(g+1)*na] for g in (x1, y1, x2, y2, obj, best_cls, area, pad).
# ----------------------------------------------------------------------------
def _conv2_head_kernel(a2T_ref, w2T_ref, b2_ref, wd_ref, bd_ref, o_ref, *,
                       anchors, stride, nc, na, h, w, tm):
    # conv2 (3x3 s2 fused Conv+BN+SiLU): y^T = SiLU(W2^T @ A2^T + b2) [32, tm].
    y = jnp.dot(w2T_ref[...], a2T_ref[...], preferred_element_type=jnp.float32)
    y = y + b2_ref[...]
    y = y * pl.reciprocal(1.0 + jnp.exp(-y), approx=True)          # SiLU (EUP)

    # Detect head fused in VMEM (y never written to HBM); f32 matmul, K=32.
    head = jnp.dot(wd_ref[...], y, preferred_element_type=jnp.float32)
    head = head + bd_ref[...]                                       # [na*(5+nc), tm]
    sig = 1.0 / (1.0 + jnp.exp(-head))          # exact sigmoid for decode parity

    # Per-pixel grid coords from program_id + iota (no HBM grid tensors).
    p = pl.program_id(0) * tm + jax.lax.broadcasted_iota(jnp.int32, (1, tm), 1)
    q1, gx_i = _divmod_static(p, w)             # gx = p % w
    _, gy_i = _divmod_static(q1, h)             # gy = (p // w) % h
    gx = gx_i.astype(jnp.float32)
    gy = gy_i.astype(jnp.float32)

    # Anchor (na, 1) sublane vectors built with iota+select (static constants).
    sub = jax.lax.broadcasted_iota(jnp.int32, (na, 1), 0)
    aw = jnp.zeros((na, 1), jnp.float32)
    ah = jnp.zeros((na, 1), jnp.float32)
    for a in range(na):
        aw = jnp.where(sub == a, float(anchors[a][0]), aw)
        ah = jnp.where(sub == a, float(anchors[a][1]), ah)

    # Attribute-major rows: each attribute is one dense (na, tm) sublane block.
    tx = sig[0 * na:1 * na, :]
    ty = sig[1 * na:2 * na, :]
    tw = sig[2 * na:3 * na, :]
    th = sig[3 * na:4 * na, :]
    obj = sig[4 * na:5 * na, :]

    bx = (tx * 2.0 - 0.5 + gx) * stride
    by = (ty * 2.0 - 0.5 + gy) * stride
    bw = (tw * 2.0) ** 2 * aw
    bh = (th * 2.0) ** 2 * ah
    x1 = bx - 0.5 * bw
    x2 = bx + 0.5 * bw
    y1 = by - 0.5 * bh
    y2 = by + 0.5 * bh

    # Class argmax with FIRST-index tie-break (matches torch.argmax),
    # all anchors at once per class.
    cmax = sig[5 * na:6 * na, :]
    best = jnp.zeros_like(obj)
    for c in range(1, nc):
        cv = sig[(5 + c) * na:(6 + c) * na, :]
        hit = cv > cmax
        best = jnp.where(hit, jnp.float32(c), best)
        cmax = jnp.where(hit, cv, cmax)

    # Per-group lane-dense stores (free intermediates early; no big concat).
    o_ref[0 * na:1 * na, :] = x1
    o_ref[1 * na:2 * na, :] = y1
    o_ref[2 * na:3 * na, :] = x2
    o_ref[3 * na:4 * na, :] = y2
    o_ref[4 * na:5 * na, :] = obj
    o_ref[5 * na:6 * na, :] = best
    o_ref[6 * na:7 * na, :] = (x2 - x1) * (y2 - y1)
    o_ref[7 * na:8 * na, :] = jnp.zeros_like(obj)


def conv2_head_decode(a2T, w2T, b2, wd, bd, *, anchors, stride, nc, na, h, w,
                      cap=4096):
    """a2T:[K,M] bf16 patches -> [8*na, M] f32 attribute-major decoded slab."""
    K, M = a2T.shape
    C2 = w2T.shape[0]
    no_all = na * (5 + nc)
    tm, mp = _plan_m(M, cap)
    if mp != M:
        a2T = jnp.pad(a2T, ((0, 0), (0, mp - M)))
    kern = functools.partial(_conv2_head_kernel, anchors=anchors,
                             stride=float(stride), nc=nc, na=na, h=h, w=w, tm=tm)
    slab = pl.pallas_call(
        kern,
        out_shape=jax.ShapeDtypeStruct((8 * na, mp), jnp.float32),
        grid=(mp // tm,),
        in_specs=[pl.BlockSpec((K, tm), lambda i: (0, i)),
                  pl.BlockSpec((C2, K), lambda i: (0, 0)),
                  pl.BlockSpec((C2, 1), lambda i: (0, 0)),
                  pl.BlockSpec((no_all, C2), lambda i: (0, 0)),
                  pl.BlockSpec((no_all, 1), lambda i: (0, 0))],
        out_specs=pl.BlockSpec((8 * na, tm), lambda i: (0, i)),
        compiler_params=pltpu.CompilerParams(
            dimension_semantics=("parallel",)),
    )(a2T, w2T, b2.reshape(C2, 1), wd, bd.reshape(no_all, 1))
    return slab[:, :M] if mp != M else slab


# ----------------------------------------------------------------------------
# Glue: transposed (lane-dense) im2col lowering for 3x3 convs (plain JAX).
# TODO(synk): im2col is still materialized (bf16) in HBM; fusing the 3x3 halo
#             reads into the conv kernel via manual make_async_copy is the
#             remaining ~9x traffic win for large inputs.
# ----------------------------------------------------------------------------
def im2col_T(x_cbhw, k, stride, pad):
    C, B, H, W = x_cbhw.shape
    xp = jnp.pad(x_cbhw, ((0, 0), (0, 0), (pad, pad), (pad, pad)))
    Ho = (H + 2 * pad - k) // stride + 1
    Wo = (W + 2 * pad - k) // stride + 1
    cols = []
    for di in range(k):
        for dj in range(k):
            cols.append(xp[:, :, di:di + stride * Ho:stride,
                           dj:dj + stride * Wo:stride])
    patches = jnp.concatenate(cols, axis=0)            # [k*k*C, B, Ho, Wo]
    return patches.reshape(k * k * C, B * Ho * Wo), (B, Ho, Wo)


# ----------------------------------------------------------------------------
# Synthetic, deterministic "loaded & fused" YOLOv5 model
# ----------------------------------------------------------------------------
class CustomYOLOv5:
    NA = 3   # anchors per level
    NC = 2   # classes
    NO = 5 + NC

    def __init__(self):
        key = jax.random.PRNGKey(0)
        k1, k2, k3, k4, k5, k6 = jax.random.split(key, 6)
        # conv1: 3 -> 16, k3 s2 p1, fused Conv+BN+SiLU (transposed bf16 weights)
        w1 = 0.1 * jax.random.normal(k1, (3 * 3 * 3, 16), jnp.float32)
        self.w1T = w1.T.astype(jnp.bfloat16)                       # [16, 27]
        self.b1 = 0.01 * jax.random.normal(k2, (16,), jnp.float32)
        # conv2: 16 -> 32, k3 s2 p1, fused Conv+BN+SiLU
        w2 = 0.1 * jax.random.normal(k3, (3 * 3 * 16, 32), jnp.float32)
        self.w2T = w2.T.astype(jnp.bfloat16)                       # [32, 144]
        self.b2 = 0.01 * jax.random.normal(k4, (32,), jnp.float32)
        # detect head: 1x1 conv 32 -> na*(5+nc); rows pre-permuted host-side to
        # ATTRIBUTE-major order (tx for all anchors, then ty, ...) for the
        # block-wise decode in the fused kernel.
        wd = 0.1 * jax.random.normal(k5, (32, self.NA * self.NO), jnp.float32)
        bd = 0.01 * jax.random.normal(k6, (self.NA * self.NO,), jnp.float32)
        perm = jnp.array([a * self.NO + k
                          for k in range(self.NO) for a in range(self.NA)])
        self.wd = wd.T[perm]                                       # [21, 32] f32
        self.bd = bd[perm]
        self.anchors = ((10.0, 13.0), (16.0, 30.0), (33.0, 23.0))  # static
        self.stride = 4  # 16 -> 8 -> 4

    def _model(self, img_nchw):
        B = img_nchw.shape[0]
        # NCHW -> lane-dense [C, B, H, W] bf16 (pixels end up on lanes everywhere)
        x = jnp.transpose(img_nchw, (1, 0, 2, 3)).astype(jnp.bfloat16)
        # stem conv 1: bf16 im2col -> tiled transposed MXU matmul, bf16 out
        a1T, (_, H1, W1) = im2col_T(x, 3, 2, 1)
        y1T = convT_silu(a1T, self.w1T, self.b1, cap=8192)   # [16, B*H1*W1] bf16
        # conv2 patches stay bf16 & lane-dense; conv2 + head + decode + area
        # are one fused kernel -> y2 never round-trips HBM, no XLA transpose.
        a2T, (_, H2, W2) = im2col_T(y1T.reshape(16, B, H1, W1), 3, 2, 1)
        M = B * H2 * W2
        slab = conv2_head_decode(a2T, self.w2T, self.b2, self.wd, self.bd,
                                 anchors=self.anchors, stride=self.stride,
                                 nc=self.NC, na=self.NA, h=H2, w=W2,
                                 cap=4096)                    # [8*NA, M] f32
        # bbox areas straight from the lane-dense slab rows (no column gather)
        areas = slab[6 * self.NA:7 * self.NA, :].T.reshape(-1)  # pixel-major
        # consumer-format detections [M*NA, 6]: (x1, y1, x2, y2, obj, best_cls)
        dets = slab.reshape(8, self.NA, M).transpose(2, 1, 0)
        dets = dets.reshape(M * self.NA, 8)[:, :6]
        # TODO(synk): no NMS / confidence filtering (data-dependent output
        # size); raw decoded pre-NMS detections are returned, like the head.
        return dets, areas

    def forward(self, img):
        dets, areas = self._model(img)
        results = dets
        pixel_values = [int(v) for v in jax.device_get(areas)]
        return (results, pixel_values)

    __call__ = forward


if __name__ == "__main__":
    model = CustomYOLOv5()
    img = jax.random.normal(jax.random.PRNGKey(0), (2, 3, 16, 16), jnp.float32)
    results, pixel_values = model(img)
    jax.block_until_ready(results)
    assert results.shape == (2 * 4 * 4 * 3, 6)
    assert len(pixel_values) == results.shape[0]
    assert all(isinstance(v, int) for v in pixel_values)
    print("KERNEL_OK")
</pallas_src>

<mosaic_0001>
module attributes {stable_mosaic.version = 11 : i64} {
  func.func @_convT_silu_kernel(%arg0: i32, %arg1: memref<27x128xbf16, #tpu.memory_space<vmem>>, %arg2: memref<16x27xbf16, #tpu.memory_space<vmem>>, %arg3: memref<16x1xf32, #tpu.memory_space<vmem>>, %arg4: memref<16x128xbf16, #tpu.memory_space<vmem>>) attributes {dimension_semantics = [#tpu.dimension_semantics<parallel>], iteration_bounds = array<i64: 1>, scalar_prefetch = 0 : i64, scratch_operands = 0 : i64, tpu.core_type = #tpu.core_type<tc>, window_params = [{transform_indices = @transform_0, window_bounds = array<i64: 27, 128>}, {pipeline_mode = #tpu.pipeline_mode<synchronous>, transform_indices = @transform_1, window_bounds = array<i64: 16, 27>}, {pipeline_mode = #tpu.pipeline_mode<synchronous>, transform_indices = @transform_2, window_bounds = array<i64: 16, 1>}, {transform_indices = @transform_3, window_bounds = array<i64: 16, 128>}]} {
    %c0 = arith.constant 0 : index
    %c0_0 = arith.constant 0 : index
    %0 = vector.load %arg2[%c0, %c0_0] : memref<16x27xbf16, #tpu.memory_space<vmem>>, vector<16x27xbf16>
    %c0_1 = arith.constant 0 : index
    %c0_2 = arith.constant 0 : index
    %1 = vector.load %arg1[%c0_1, %c0_2] : memref<27x128xbf16, #tpu.memory_space<vmem>>, vector<27x128xbf16>
    %cst = arith.constant dense<0.000000e+00> : vector<16x128xf32>
    %2 = tpu.matmul %0, %1, %cst {dimension_numbers = #tpu.dot_dimension_numbers<[1], [0], [0], [1], [0, 0, 1, 1], [], []>} : vector<16x27xbf16>, vector<27x128xbf16>, vector<16x128xf32> -> vector<16x128xf32>
    %c0_3 = arith.constant 0 : index
    %c0_4 = arith.constant 0 : index
    %3 = vector.load %arg3[%c0_3, %c0_4] : memref<16x1xf32, #tpu.memory_space<vmem>>, vector<16x1xf32>
    %4 = vector.broadcast %3 : vector<16x1xf32> to vector<16x128xf32>
    %5 = arith.addf %2, %4 : vector<16x128xf32>
    %cst_5 = arith.constant 0.000000e+00 : f32
    %6 = vector.broadcast %cst_5 : f32 to vector<16x128xf32>
    %7 = arith.subf %6, %5 : vector<16x128xf32>
    %8 = math.exp %7 : vector<16x128xf32>
    %cst_6 = arith.constant 1.000000e+00 : f32
    %9 = vector.broadcast %cst_6 : f32 to vector<16x128xf32>
    %10 = arith.addf %9, %8 : vector<16x128xf32>
    %11 = tpu.reciprocal %10 {approx = true} : vector<16x128xf32> -> vector<16x128xf32>
    %12 = arith.mulf %5, %11 : vector<16x128xf32>
    %13 = arith.truncf %12 : vector<16x128xf32> to vector<16x128xbf16>
    %c0_7 = arith.constant 0 : index
    %c0_8 = arith.constant 0 : index
    %14 = vector.load %arg4[%c0_7, %c0_8] : memref<16x128xbf16, #tpu.memory_space<vmem>>, vector<16x128xbf16>
    tpu.vector_store %arg4[%c0_7, %c0_8], %13 {strides = array<i32>} : memref<16x128xbf16, #tpu.memory_space<vmem>>, vector<16x128xbf16>,
    return
  }
  func.func @transform_0(%arg0: i32) -> (i32, i32) {
    %c0_i32 = arith.constant 0 : i32
    %c0_i32_0 = arith.constant 0 : i32
    return %c0_i32, %arg0 : i32, i32
  }
  func.func @transform_1(%arg0: i32) -> (i32, i32) {
    %c0_i32 = arith.constant 0 : i32
    %c0_i32_0 = arith.constant 0 : i32
    %c0_i32_1 = arith.constant 0 : i32
    return %c0_i32, %c0_i32_0 : i32, i32
  }
  func.func @transform_2(%arg0: i32) -> (i32, i32) {
    %c0_i32 = arith.constant 0 : i32
    %c0_i32_0 = arith.constant 0 : i32
    %c0_i32_1 = arith.constant 0 : i32
    return %c0_i32, %c0_i32_0 : i32, i32
  }
  func.func @transform_3(%arg0: i32) -> (i32, i32) {
    %c0_i32 = arith.constant 0 : i32
    %c0_i32_0 = arith.constant 0 : i32
    return %c0_i32, %arg0 : i32, i32
  }
}

</mosaic_0001>

<llo_original>
// kernel: tpu_custom_call.1
$region0: #{tpu_custom_call.1}
  #allocation0 [shape = 'u32[]', space=smem, size = 0x4, offset = 0x4, fixed_abs, tag = 'smem constant byte address 0x4 - core index']
  #allocation1 [shape = 'u32[144,128]{1,0:T(1,128)}', space=vmem, size = 0x12000, scoped, tag = 'internal scratch']
  %s0 = inlined_call_operand.vmem [shape: bf16[27,128], index: 0, kind: input, shape index: {}]
  %s1 = inlined_call_operand.hbm [shape: bf16[16,27], index: 1, kind: input, shape index: {}]
  %s2 = inlined_call_operand.vmem [shape: f32[16,1], index: 2, kind: input, shape index: {}]
  %s3 = inlined_call_operand.hbm [shape: bf16[16,128], index: 3, kind: output, shape index: {}]
  %s4 = sld [smem:[#allocation0]]
  $region26: #{tpu_custom_call.1} parent=0
    _
  %s6 = ssub.s32 1, %s4
  %s7 = scalar_select 0, %s6, %s4
  $region1: #{tpu_custom_call.1} parent=0
    #allocation2 [shape = 'u8[4096]{0}', space=vmem, size = 0x1000, scoped, tag = 'input window, operand 1, single buffered']
    #allocation3 [shape = 's32[1]{0}', space=sflag, size = 0x4, scoped, tag = 'scoped memory for tpu_custom_call.1']
    #allocation4 [shape = 's32[1]{0}', space=sflag, size = 0x4, scoped, tag = 'scoped memory for tpu_custom_call.1']
    #allocation5 [shape = 'u8[4096]{0}', space=vmem, size = 0x1000, scoped, tag = 'output window, operand 0, single buffered']
    %8 = vsyncpa [#allocation3], 0
    %9 = vsyncpa [#allocation4], 0
    // Predicated region
    $region2: #{tpu_custom_call.1} parent=1 // pred_check
      _
    $region3: #{tpu_custom_call.1} parent=1 // pred_check_branch
      %11 = sbr.rel (0) target = $region5
    $region4: #{tpu_custom_call.1} parent=1 // pred_region
      _
    $region5: #{tpu_custom_call.1} parent=1 // pred_fallthru
      _
    // Predicated region
    $region6: #{tpu_custom_call.1} parent=1 // pred_check
      _
    $region7: #{tpu_custom_call.1} parent=1 // pred_check_branch
      %13 = sbr.rel (0) target = $region9
    $region8: #{tpu_custom_call.1} parent=1 // pred_region
      %s15 = ssub.s32 128, 128
      %16 = vsyncadd [#allocation3], %s15
      %s17 = sshll.u32 [#allocation2], 4
      %s18 = int_to_ptr.vmem [resolvable:$true] %s17
      %23 = dma.hbm_to_vmem [thread:$0]  %s1, 128, %s18, [#allocation3], 64, 64, 4
    $region9: #{tpu_custom_call.1} parent=1 // pred_fallthru
      _
    // Predicated region
    $region10: #{tpu_custom_call.1} parent=1 // pred_check
      _
    $region11: #{tpu_custom_call.1} parent=1 // pred_check_branch
      %25 = sbr.rel (0) target = $region13
    $region12: #{tpu_custom_call.1} parent=1 // pred_region
      _
    $region13: #{tpu_custom_call.1} parent=1 // pred_fallthru
      _
    // Predicated region
    $region14: #{tpu_custom_call.1} parent=1 // pred_check
      _
    $region15: #{tpu_custom_call.1} parent=1 // pred_check_branch
      %27 = sbr.rel (0) target = $region17
    $region16: #{tpu_custom_call.1} parent=1 // pred_region
      %28 = dma.done [#allocation3], 128
    $region17: #{tpu_custom_call.1} parent=1 // pred_fallthru
      _
    %v30 = vld [vmem:[#allocation2] sm:$0xf]
    %v31 = vld [vmem:[#allocation2 + $0x4] sm:$0xf]
    %v32 = vld [vmem:[%s0] sm:$0xf]
    %v33 = vld [vmem:[%s0 + $0x4] sm:$0xf]
    %v34 = vld [vmem:[%s0 + $0x8] sm:$0xf]
    %v35 = vld [vmem:[%s0 + $0xc] sm:$0x3]
    %v36 = vld [vmem:[%s2] sm:$0xff]
    %v37 = vld [vmem:[%s2 + $0x8] sm:$0xff]
    %39 = vset.pattern.permute.xlu0 0
    %40 = vperm.xlu0 %39, %v36
    %v41 = vpop.permute.xlu0 %40
    %44 = vset.pattern.permute.xlu0 0
    %45 = vperm.xlu0 %44, %v37
    %v46 = vpop.permute.xlu0 %45
    %v50 = vunpack.c.l.b16 %v30
    %v51 = vunpack.c.l.b16 %v31
    %v52 = vpack.c.b16 %v51, %v50
    %v57 = vunpack.c.l.b16 %v32
    %v58 = vunpack.c.l.b16 %v33
    %v59 = vunpack.c.l.b16 %v34
    %v60 = vunpack.c.l.b16 %v35
    %v61 = vpack.c.b16 %v58, %v57
    %v62 = vpack.c.b16 %v60, %v59
    %vm64 = vcmask 220160
    %v66 = vsel %vm64, %v52, 0
    %vm68 = vcmask 1044480
    %vm69 = vcmask 1045504
    %v70 = vsel %vm68, 4294967295, 65535
    %v71 = vsel %vm69, %v70, 0
    %v73 = vand.u32 %v62, %v71
    %75 = vmatprep.subr.bf16.mxu0 0
    %76 = vmatpush1.bf16.msra.mxu0 0
    %77 = vmatprep.subr.bf16.mxu0 0
    %78 = vmatpush1.bf16.msra.mxu0 0
    %79 = vmatprep.subr.bf16.mxu0 0
    %80 = vmatpush1.bf16.msra.mxu0 0
    %81 = vmatprep.subr.bf16.mxu0 0
    %82 = vmatpush1.bf16.msra.mxu0 0
    %83 = vmatprep.subr.bf16.mxu0 0
    %84 = vmatpush1.bf16.msra.mxu0 0
    %85 = vmatprep.subr.bf16.mxu0 0
    %86 = vmatpush1.bf16.msra.mxu0 0
    %87 = vmatprep.subr.bf16.mxu0 0
    %88 = vmatpush1.bf16.msra.mxu0 %v73
    %89 = vmatprep.subr.bf16.mxu0 0
    %90 = vmatpush1.bf16.msra.mxu0 %v61
    %91 = vmatprep.subr.bf16.mxu0 0
    %92 = vmatpush2.bf16.msra.mxu0 0
    %93 = vmatprep.subr.bf16.mxu0 0
    %94 = vmatpush2.bf16.msra.mxu0 0
    %95 = vmatprep.subr.bf16.mxu0 0
    %96 = vmatpush2.bf16.msra.mxu0 0
    %97 = vmatprep.subr.bf16.mxu0 0
    %98 = vmatpush2.bf16.msra.mxu0 0
    %99 = vmatprep.subr.bf16.mxu0 0
    %100 = vmatpush2.bf16.msra.mxu0 0
    %101 = vmatprep.subr.bf16.mxu0 0
    %102 = vmatpush2.bf16.msra.mxu0 0
    %103 = vmatprep.subr.bf16.mxu0 0
    %104 = vmatpush2.bf16.msra.mxu0 0
    %105 = vmatprep.subr.bf16.mxu0 0
    %106 = vmatpush2.bf16.msra.mxu0 0
    %107 = vmatprep.mubr.bf16.mxu0 0
    %108 = vmatmul.mubr.bf16.gmra.mxu0 %v66
    %v109 = vpop.f32.mrf.mxu0
    %v110 = vadd.f32 %v41, %v109
    %v111 = vpop.f32.mrf.mxu0
    %v112 = vpop.f32.mrf.mxu0
    %v113 = vadd.f32 %v46, %v112
    %v114 = vpop.f32.mrf.mxu0
    %115 = vdwg.mxu0
    %v116 = vsub.f32 0.0, %v110
    %v117 = vsub.f32 0.0, %v113
    %v118 = vmul.f32 %v116, 1.442695
    %v119 = vpow.pop %v118
    %v120 = vmul.f32 %v117, 1.442695
    %v121 = vpow.pop %v120
    %v122 = vadd.f32 %v119, 1.0
    %v123 = vadd.f32 %v121, 1.0
    %v124 = vrcp.pop %v122
    %v125 = vrcp.pop %v123
    %v126 = vmul.f32 %v110, %v124
    %v127 = vmul.f32 %v113, %v125
    %v128 = vpack.c.bf16 %v127, %v126
    %v130 = vunpack.c.l.b16 %v128
    %v131 = vunpack.c.h.b16 %v128
    %v132 = vpack.c.b16 %v130, %v130
    %v133 = vpack.c.b16 %v131, %v131
    %136 = vst [vmem:[#allocation5] sm:$0xf] %v132
    %137 = vst [vmem:[#allocation5 + $0x4] sm:$0xf] %v133
    // Predicated region
    $region18: #{tpu_custom_call.1} parent=1 // pred_check
      _
    $region19: #{tpu_custom_call.1} parent=1 // pred_check_branch
      %139 = sbr.rel (0) target = $region21
    $region20: #{tpu_custom_call.1} parent=1 // pred_region
      %s141 = ssub.s32 128, 128
      %142 = vsyncadd [#allocation4], %s141
      %s143 = sshll.u32 [#allocation5], 4
      %s144 = int_to_ptr.vmem [resolvable:$true] %s143
      %149 = dma.vmem_to_hbm [thread:$0]  %s144, 128, %s3, [#allocation4], 64, 64, 4
    $region21: #{tpu_custom_call.1} parent=1 // pred_fallthru
      _
    // Predicated region
    $region22: #{tpu_custom_call.1} parent=1 // pred_check
      _
    $region23: #{tpu_custom_call.1} parent=1 // pred_check_branch
      %151 = sbr.rel (0) target = $region25
    $region24: #{tpu_custom_call.1} parent=1 // pred_region
      %152 = dma.done [#allocation4], 128
    $region25: #{tpu_custom_call.1} parent=1 // pred_fallthru
      _
    %153 = vsyncpa [#allocation3], 1
    %154 = vsyncpa [#allocation4], 1

</llo_original>
